<compile_context>
chip_gen: v6e
topology: v6e:2x2x1
jax: 0.10.0
libtpu: 0.0.40
codegen_flags: <defaults>
</compile_context>

<pallas_src>
import functools
import numpy as np
import jax
import jax.numpy as jnp
from jax import lax
from jax.experimental import pallas as pl
from jax.experimental.pallas import tpu as pltpu

FS = 30.0        # sampling rate used by peak_loss' periodogram
ALPHA = 0.5      # peak_loss alpha


def _cdiv(a, b):
    return -(-a // b)


def _next_pow2(n):
    return 1 if n <= 1 else 2 ** int(np.ceil(np.log2(n)))


def _tpu_generation():
    """Best-effort TPU generation from device_kind; conservative fallback."""
    try:
        kind = jax.devices()[0].device_kind.lower()
    except Exception:
        return 6
    if "v7" in kind or "7x" in kind:
        return 7
    if "v6" in kind:
        return 6
    if "v5" in kind:
        return 5
    return 6


@functools.lru_cache(maxsize=None)
def _make_dft_tables(T, fs, half_align):
    """Packed band-limited DFT table (memoized per (T, fs, half_align)).

    Returns (table, freqs, nb, half):
      table : (T, 2*half) bf16 -- cos bins in lanes [0, nb), sin bins in
              lanes [half, half+nb); remaining lanes are zero.
      freqs : (1, 2*half) f32  -- band frequencies in lanes [0, nb).
    """
    N = _next_pow2(T)                       # _nearest_power_of_2 (nfft)
    k = np.arange(N // 2 + 1)
    f = fs * k / N
    band = np.nonzero((f >= 0.75) & (f <= 2.5))[0]
    ks = k[band].astype(np.float64)
    fsel = f[band].astype(np.float32)
    nb = int(len(ks))
    # half_align = 64 on v5e (128-wide MXU), 128 on v6e/v7x (256-wide MXU).
    half = half_align * max(1, _cdiv(nb, half_align))
    tt = np.arange(T, dtype=np.float64)
    ang = 2.0 * np.pi * np.outer(tt, ks) / N            # (T, nb)
    table = np.zeros((T, 2 * half), np.float32)
    table[:, :nb] = np.cos(ang)
    table[:, half:half + nb] = np.sin(ang)
    freqs = np.zeros((1, 2 * half), np.float32)
    freqs[0, :nb] = fsel
    return (jnp.asarray(table, dtype=jnp.bfloat16),
            jnp.asarray(freqs, dtype=jnp.float32), nb, half)


def _make_kernel(B, TB, T, nb, half, use_slice_add):
    inv_tm1 = np.float32(1.0 / (T - 1))

    def kernel(pred_ref, tgt_ref, table_ref, freqs_ref, out_ref):
        fz = jnp.float32(0.0)
        lane = lax.broadcasted_iota(jnp.int32, (TB, T), 1)
        first = lane == 0
        last = lane == T - 1
        interior = jnp.logical_not(jnp.logical_or(first, last))
        table = table_ref[...]                            # (T, 2*half) bf16
        freqs = freqs_ref[...]                            # (1, 2*half) f32

        def gradient(x):
            # np.gradient: one-sided at edges, central difference inside.
            nxt = pltpu.roll(x, T - 1, 1)                 # x[i+1] (circular)
            prv = pltpu.roll(x, 1, 1)                     # x[i-1]
            g = jnp.where(first, nxt - x,
                          jnp.where(last, x - prv, 0.5 * (nxt - prv)))
            return g, nxt, prv

        def stats(x):
            """Per-signal statistics on a single (TB, T) tile."""
            # standardize with torch.std (unbiased) -> z; EUP rsqrt.
            mean = jnp.mean(x, axis=-1, keepdims=True)
            xc = x - mean
            var = jnp.sum(xc * xc, axis=-1, keepdims=True) * inv_tm1
            z = xc * lax.rsqrt(var)

            # shared neighbour rolls feed both np.gradient and peak masks.
            g1, nxt, prv = gradient(x)
            is_max = (x > prv) & (x > nxt) & interior     # strict local maxima
            is_min = (x < prv) & (x < nxt) & interior     # peaks of -x
            g2, _, _ = gradient(g1)

            ss1 = jnp.sum(g1 * g1, axis=-1, keepdims=True)
            ss2 = jnp.sum(g2 * g2, axis=-1, keepdims=True)
            cmax = jnp.sum(is_max.astype(jnp.float32), axis=-1, keepdims=True)
            cmin = jnp.sum(is_min.astype(jnp.float32), axis=-1, keepdims=True)

            # Band-limited periodogram peak frequency: one fused bf16 MXU
            # matmul on the zero-mean signal (nfft==T => identical band power
            # to detrend=False; better bf16 fidelity otherwise).
            y = jnp.dot(xc.astype(jnp.bfloat16), table,
                        preferred_element_type=jnp.float32)   # (TB, 2*half)
            yy = y * y
            if use_slice_add:
                # half % 128 == 0: vreg-aligned lane slices, no XLU roll.
                p = yy[:, :half] + yy[:, half:]
                bidx = lax.broadcasted_iota(jnp.int32, p.shape, 1)
                power = jnp.where(bidx < nb, p, -jnp.inf)
                fr = freqs[:, :half]
            else:
                bidx = lax.broadcasted_iota(jnp.int32, yy.shape, 1)
                power = jnp.where(bidx < nb, yy + pltpu.roll(yy, half, 1),
                                  -jnp.inf)
                fr = freqs
            maxp = jnp.max(power, axis=-1, keepdims=True)
            # freqs is monotone increasing over the band -> min over argmax
            # ties == first argmax (matches np.argmax).
            freq = jnp.min(jnp.where(power == maxp, fr, jnp.inf),
                           axis=-1, keepdims=True)        # (TB,1)
            return dict(z=z, g1=g1, g2=g2, ss1=ss1, ss2=ss2,
                        cmax=cmax, cmin=cmin,
                        is_max=is_max, is_min=is_min, freq=freq)

        pred = pred_ref[...].astype(jnp.float32)          # (TB, T)
        tgt = tgt_ref[...].astype(jnp.float32)            # (TB, T)
        sp = stats(pred)
        st = stats(tgt)

        # ---------------- neg_Pearson_Loss ----------------
        # standardized signals => pearson == sum(zp*zt)/(T-1)
        pearson = jnp.sum(sp["z"] * st["z"], axis=-1, keepdims=True) * inv_tm1

        # ---------------- derivative_loss (cos_sim of 1st/2nd gradients) ----
        c1 = (jnp.sum(sp["g1"] * st["g1"], axis=-1, keepdims=True)
              * lax.rsqrt(sp["ss1"] * st["ss1"]))
        c2 = (jnp.sum(sp["g2"] * st["g2"], axis=-1, keepdims=True)
              * lax.rsqrt(sp["ss2"] * st["ss2"]))

        # ---------------- peak_loss (y_true = targets, y_pred = predictions) -
        pcd = jnp.abs(st["cmax"] - sp["cmax"])
        ncd = jnp.abs(st["cmin"] - sp["cmin"])
        # Peak-value terms use prediction peaks only (as in the reference).
        spv = jnp.sum(jnp.where(sp["is_max"], pred, fz), axis=-1, keepdims=True)
        snv = jnp.sum(jnp.where(sp["is_min"], pred, fz), axis=-1, keepdims=True)
        # Exact (TB,1) divides; guard rows with no peaks (reference would NaN
        # on an empty mean).
        pvd = jnp.where(sp["cmax"] > 0,
                        jnp.abs(1.0 - spv / jnp.maximum(sp["cmax"], 1.0)), fz)
        nvd = jnp.where(sp["cmin"] > 0,
                        jnp.abs(1.0 - snv / jnp.maximum(sp["cmin"], 1.0)), fz)
        freq_diff = jnp.abs(st["freq"] - sp["freq"])

        peak = ALPHA * (pcd + ncd + pvd + nvd) + freq_diff

        # ---------------- combine (per row) ----------------
        # pearson_loss = mean(1 - pearson); derivative_loss = 2 - mean(c1+c2);
        # peak_loss = mean(peak).  The "/B" and "+2" happen in the wrapper.
        row_total = (1.0 - pearson) - (c1 + c2) + peak    # (TB,1)

        # Zero out padded rows beyond the true batch size.
        row = pl.program_id(0) * TB + lax.broadcasted_iota(jnp.int32, (TB, 1), 0)
        out_ref[...] = jnp.where(row < B, row_total, fz)

    return kernel


def _const_spec(shape, single_buffer):
    """BlockSpec for a grid-constant operand; single-buffered on v7x."""
    if single_buffer:
        try:
            return pl.BlockSpec(shape, lambda i: (0, 0),
                                pipeline_mode=pl.Buffered(1))
        except TypeError:
            pass
    return pl.BlockSpec(shape, lambda i: (0, 0))


def bvp_velocity_loss(predictions, targets):
    """predictions, targets: (B, T) float32. Returns scalar loss."""
    predictions = jnp.asarray(predictions, jnp.float32)
    targets = jnp.asarray(targets, jnp.float32)
    B, T = predictions.shape

    gen = _tpu_generation()
    half_align = 64 if gen <= 5 else 128        # v5e: 128-wide MXU pack
    table, freqs, nb, half = _make_dft_tables(T, FS, half_align)
    use_slice_add = (half % 128 == 0)

    # Batch tiling: blocks of TB rows (multiple of 8).
    #   v5e/v6e: up to 256 rows/block; v7x: <=128 rows/block and an even
    #   number of blocks so the "parallel" axis splits across both TCs.
    tb_cap = 128 if gen >= 7 else 256
    nblk = max(_cdiv(B, tb_cap), 2 if gen >= 7 else 1)
    if gen >= 7 and nblk % 2:
        nblk += 1
    TB = _cdiv(_cdiv(B, nblk), 8) * 8
    Bp = nblk * TB
    if Bp != B:
        pad = ((0, Bp - B), (0, 0))
        predictions = jnp.pad(predictions, pad)
        targets = jnp.pad(targets, pad)

    # v7x has only 64 MiB VMEM per TC: leave headroom for Mosaic scratch.
    vmem_limit = (48 if gen >= 7 else 64) * 1024 * 1024

    kernel = _make_kernel(B, TB, T, nb, half, use_slice_add)
    row_totals = pl.pallas_call(
        kernel,
        out_shape=jax.ShapeDtypeStruct((Bp, 1), jnp.float32),
        grid_spec=pltpu.PrefetchScalarGridSpec(
            num_scalar_prefetch=0,
            grid=(nblk,),
            in_specs=[
                pl.BlockSpec((TB, T), lambda i: (i, 0)),          # predictions
                pl.BlockSpec((TB, T), lambda i: (i, 0)),          # targets
                _const_spec((T, 2 * half), gen >= 7),             # cos|sin table
                _const_spec((1, 2 * half), gen >= 7),             # band freqs
            ],
            out_specs=pl.BlockSpec((TB, 1), lambda i: (i, 0)),
        ),
        compiler_params=pltpu.CompilerParams(
            dimension_semantics=("parallel",),
            vmem_limit_bytes=vmem_limit,
        ),
    )(predictions, targets, table, freqs)

    # derivative_loss contributes the "+2"; all three terms are means over B.
    return jnp.sum(row_totals) / B + 2.0


if __name__ == "__main__":
    key = jax.random.PRNGKey(0)
    k1, k2 = jax.random.split(key)
    B, T = 2, 128
    tt = jnp.arange(T, dtype=jnp.float32) / FS
    # Pulse-like synthetic signals (~1.2 Hz target, ~1.5 Hz prediction) + noise.
    targets = (jnp.sin(2.0 * np.pi * 1.2 * tt)[None, :] +
               0.05 * jax.random.normal(k1, (B, T), dtype=jnp.float32))
    predictions = (jnp.sin(2.0 * np.pi * 1.5 * tt + 0.3)[None, :] +
                   0.05 * jax.random.normal(k2, (B, T), dtype=jnp.float32))

    loss = bvp_velocity_loss(predictions, targets)
    jax.block_until_ready(loss)
    print("KERNEL_OK")
</pallas_src>

<mosaic_0001>
module attributes {stable_mosaic.version = 11 : i64} {
  func.func @kernel(%arg0: i32, %arg1: memref<8x128xf32, #tpu.memory_space<vmem>>, %arg2: memref<8x128xf32, #tpu.memory_space<vmem>>, %arg3: memref<128x256xbf16, #tpu.memory_space<vmem>>, %arg4: memref<1x256xf32, #tpu.memory_space<vmem>>, %arg5: memref<8x1xf32, #tpu.memory_space<vmem>>) attributes {dimension_semantics = [#tpu.dimension_semantics<parallel>], iteration_bounds = array<i64: 1>, scalar_prefetch = 0 : i64, scratch_operands = 0 : i64, tpu.core_type = #tpu.core_type<tc>, window_params = [{transform_indices = @transform_0, window_bounds = array<i64: 8, 128>}, {transform_indices = @transform_1, window_bounds = array<i64: 8, 128>}, {pipeline_mode = #tpu.pipeline_mode<synchronous>, transform_indices = @transform_2, window_bounds = array<i64: 128, 256>}, {pipeline_mode = #tpu.pipeline_mode<synchronous>, transform_indices = @transform_3, window_bounds = array<i64: 1, 256>}, {transform_indices = @transform_4, window_bounds = array<i64: 8, 1>}]} {
    %0 = tpu.iota {dimensions = array<i32: 1>} : vector<8x128xi32>
    %c0_i32 = arith.constant 0 : i32
    %1 = vector.broadcast %c0_i32 : i32 to vector<8x128xi32>
    %2 = arith.cmpi eq, %0, %1 : vector<8x128xi32>
    %c127_i32 = arith.constant 127 : i32
    %3 = vector.broadcast %c127_i32 : i32 to vector<8x128xi32>
    %4 = arith.cmpi eq, %0, %3 : vector<8x128xi32>
    %5 = arith.ori %2, %4 : vector<8x128xi1>
    %cst = arith.constant dense<true> : vector<8x128xi1>
    %6 = arith.xori %5, %cst : vector<8x128xi1>
    %c0 = arith.constant 0 : index
    %c0_0 = arith.constant 0 : index
    %7 = vector.load %arg3[%c0, %c0_0] : memref<128x256xbf16, #tpu.memory_space<vmem>>, vector<128x256xbf16>
    %c0_1 = arith.constant 0 : index
    %c0_2 = arith.constant 0 : index
    %8 = vector.load %arg4[%c0_1, %c0_2] : memref<1x256xf32, #tpu.memory_space<vmem>>, vector<1x256xf32>
    %c0_3 = arith.constant 0 : index
    %c0_4 = arith.constant 0 : index
    %9 = vector.load %arg1[%c0_3, %c0_4] : memref<8x128xf32, #tpu.memory_space<vmem>>, vector<8x128xf32>
    %c0_5 = arith.constant 0 : index
    %c0_6 = arith.constant 0 : index
    %10 = vector.load %arg2[%c0_5, %c0_6] : memref<8x128xf32, #tpu.memory_space<vmem>>, vector<8x128xf32>
    %cst_7 = arith.constant dense<0.000000e+00> : vector<8xf32>
    %11 = vector.multi_reduction <add>, %9, %cst_7 [1] : vector<8x128xf32> to vector<8xf32>
    %12 = vector.shape_cast %11 : vector<8xf32> to vector<8x1xf32>
    %cst_8 = arith.constant 1.280000e+02 : f32
    %13 = vector.broadcast %cst_8 : f32 to vector<8x1xf32>
    %14 = arith.divf %12, %13 : vector<8x1xf32>
    %15 = vector.broadcast %14 : vector<8x1xf32> to vector<8x128xf32>
    %16 = arith.subf %9, %15 : vector<8x128xf32>
    %17 = arith.mulf %16, %16 : vector<8x128xf32>
    %cst_9 = arith.constant dense<0.000000e+00> : vector<8xf32>
    %18 = vector.multi_reduction <add>, %17, %cst_9 [1] : vector<8x128xf32> to vector<8xf32>
    %19 = vector.shape_cast %18 : vector<8xf32> to vector<8x1xf32>
    %cst_10 = arith.constant 0.00787401571 : f32
    %20 = vector.broadcast %cst_10 : f32 to vector<8x1xf32>
    %21 = arith.mulf %19, %20 : vector<8x1xf32>
    %22 = math.rsqrt %21 : vector<8x1xf32>
    %23 = vector.broadcast %22 : vector<8x1xf32> to vector<8x128xf32>
    %24 = arith.mulf %16, %23 : vector<8x128xf32>
    %c127_i32_11 = arith.constant 127 : i32
    %25 = tpu.dynamic_rotate %9 by %c127_i32_11 dim 1 : vector<8x128xf32>, i32 -> vector<8x128xf32>
    %c1_i32 = arith.constant 1 : i32
    %26 = tpu.dynamic_rotate %9 by %c1_i32 dim 1 : vector<8x128xf32>, i32 -> vector<8x128xf32>
    %27 = arith.subf %25, %9 : vector<8x128xf32>
    %28 = arith.subf %9, %26 : vector<8x128xf32>
    %29 = arith.subf %25, %26 : vector<8x128xf32>
    %cst_12 = arith.constant 5.000000e-01 : f32
    %30 = vector.broadcast %cst_12 : f32 to vector<8x128xf32>
    %31 = arith.mulf %30, %29 : vector<8x128xf32>
    %32 = arith.select %4, %28, %31 : vector<8x128xi1>, vector<8x128xf32>
    %33 = arith.select %2, %27, %32 : vector<8x128xi1>, vector<8x128xf32>
    %34 = arith.cmpf ogt, %9, %26 : vector<8x128xf32>
    %35 = arith.cmpf ogt, %9, %25 : vector<8x128xf32>
    %36 = arith.andi %34, %35 : vector<8x128xi1>
    %37 = arith.andi %36, %6 : vector<8x128xi1>
    %38 = arith.cmpf olt, %9, %26 : vector<8x128xf32>
    %39 = arith.cmpf olt, %9, %25 : vector<8x128xf32>
    %40 = arith.andi %38, %39 : vector<8x128xi1>
    %41 = arith.andi %40, %6 : vector<8x128xi1>
    %c127_i32_13 = arith.constant 127 : i32
    %42 = tpu.dynamic_rotate %33 by %c127_i32_13 dim 1 : vector<8x128xf32>, i32 -> vector<8x128xf32>
    %c1_i32_14 = arith.constant 1 : i32
    %43 = tpu.dynamic_rotate %33 by %c1_i32_14 dim 1 : vector<8x128xf32>, i32 -> vector<8x128xf32>
    %44 = arith.subf %42, %33 : vector<8x128xf32>
    %45 = arith.subf %33, %43 : vector<8x128xf32>
    %46 = arith.subf %42, %43 : vector<8x128xf32>
    %cst_15 = arith.constant 5.000000e-01 : f32
    %47 = vector.broadcast %cst_15 : f32 to vector<8x128xf32>
    %48 = arith.mulf %47, %46 : vector<8x128xf32>
    %49 = arith.select %4, %45, %48 : vector<8x128xi1>, vector<8x128xf32>
    %50 = arith.select %2, %44, %49 : vector<8x128xi1>, vector<8x128xf32>
    %51 = arith.mulf %33, %33 : vector<8x128xf32>
    %cst_16 = arith.constant dense<0.000000e+00> : vector<8xf32>
    %52 = vector.multi_reduction <add>, %51, %cst_16 [1] : vector<8x128xf32> to vector<8xf32>
    %53 = vector.shape_cast %52 : vector<8xf32> to vector<8x1xf32>
    %54 = arith.mulf %50, %50 : vector<8x128xf32>
    %cst_17 = arith.constant dense<0.000000e+00> : vector<8xf32>
    %55 = vector.multi_reduction <add>, %54, %cst_17 [1] : vector<8x128xf32> to vector<8xf32>
    %56 = vector.shape_cast %55 : vector<8xf32> to vector<8x1xf32>
    %57 = arith.extui %37 : vector<8x128xi1> to vector<8x128xi32>
    %58 = arith.sitofp %57 : vector<8x128xi32> to vector<8x128xf32>
    %cst_18 = arith.constant dense<0.000000e+00> : vector<8xf32>
    %59 = vector.multi_reduction <add>, %58, %cst_18 [1] : vector<8x128xf32> to vector<8xf32>
    %60 = vector.shape_cast %59 : vector<8xf32> to vector<8x1xf32>
    %61 = arith.extui %41 : vector<8x128xi1> to vector<8x128xi32>
    %62 = arith.sitofp %61 : vector<8x128xi32> to vector<8x128xf32>
    %cst_19 = arith.constant dense<0.000000e+00> : vector<8xf32>
    %63 = vector.multi_reduction <add>, %62, %cst_19 [1] : vector<8x128xf32> to vector<8xf32>
    %64 = vector.shape_cast %63 : vector<8xf32> to vector<8x1xf32>
    %65 = arith.truncf %16 : vector<8x128xf32> to vector<8x128xbf16>
    %cst_20 = arith.constant dense<0.000000e+00> : vector<8x256xf32>
    %66 = tpu.matmul %65, %7, %cst_20 {dimension_numbers = #tpu.dot_dimension_numbers<[1], [0], [0], [1], [0, 0, 1, 1], [], []>} : vector<8x128xbf16>, vector<128x256xbf16>, vector<8x256xf32> -> vector<8x256xf32>
    %67 = arith.mulf %66, %66 : vector<8x256xf32>
    %68 = vector.extract_strided_slice %67 {offsets = [0, 0], sizes = [8, 128], strides = [1, 1]} : vector<8x256xf32> to vector<8x128xf32>
    %69 = vector.extract_strided_slice %67 {offsets = [0, 128], sizes = [8, 128], strides = [1, 1]} : vector<8x256xf32> to vector<8x128xf32>
    %70 = arith.addf %68, %69 : vector<8x128xf32>
    %71 = tpu.iota {dimensions = array<i32: 1>} : vector<8x128xi32>
    %c7_i32 = arith.constant 7 : i32
    %72 = vector.broadcast %c7_i32 : i32 to vector<8x128xi32>
    %73 = arith.cmpi slt, %71, %72 : vector<8x128xi32>
    %cst_21 = arith.constant 0xFF800000 : f32
    %74 = vector.broadcast %cst_21 : f32 to vector<8x128xf32>
    %75 = arith.select %73, %70, %74 : vector<8x128xi1>, vector<8x128xf32>
    %76 = vector.extract_strided_slice %8 {offsets = [0, 0], sizes = [1, 128], strides = [1, 1]} : vector<1x256xf32> to vector<1x128xf32>
    %cst_22 = arith.constant dense<0xFF800000> : vector<8xf32>
    %77 = vector.multi_reduction <maximumf>, %75, %cst_22 [1] : vector<8x128xf32> to vector<8xf32>
    %78 = vector.shape_cast %77 : vector<8xf32> to vector<8x1xf32>
    %79 = vector.broadcast %78 : vector<8x1xf32> to vector<8x128xf32>
    %80 = arith.cmpf oeq, %75, %79 : vector<8x128xf32>
    %cst_23 = arith.constant 0x7F800000 : f32
    %81 = vector.shape_cast %76 : vector<1x128xf32> to vector<1x128xf32>
    %82 = vector.broadcast %81 : vector<1x128xf32> to vector<8x128xf32>
    %83 = vector.broadcast %cst_23 : f32 to vector<8x128xf32>
    %84 = arith.select %80, %82, %83 : vector<8x128xi1>, vector<8x128xf32>
    %cst_24 = arith.constant dense<0x7F800000> : vector<8xf32>
    %85 = vector.multi_reduction <minimumf>, %84, %cst_24 [1] : vector<8x128xf32> to vector<8xf32>
    %86 = vector.shape_cast %85 : vector<8xf32> to vector<8x1xf32>
    %cst_25 = arith.constant dense<0.000000e+00> : vector<8xf32>
    %87 = vector.multi_reduction <add>, %10, %cst_25 [1] : vector<8x128xf32> to vector<8xf32>
    %88 = vector.shape_cast %87 : vector<8xf32> to vector<8x1xf32>
    %cst_26 = arith.constant 1.280000e+02 : f32
    %89 = vector.broadcast %cst_26 : f32 to vector<8x1xf32>
    %90 = arith.divf %88, %89 : vector<8x1xf32>
    %91 = vector.broadcast %90 : vector<8x1xf32> to vector<8x128xf32>
    %92 = arith.subf %10, %91 : vector<8x128xf32>
    %93 = arith.mulf %92, %92 : vector<8x128xf32>
    %cst_27 = arith.constant dense<0.000000e+00> : vector<8xf32>
    %94 = vector.multi_reduction <add>, %93, %cst_27 [1] : vector<8x128xf32> to vector<8xf32>
    %95 = vector.shape_cast %94 : vector<8xf32> to vector<8x1xf32>
    %cst_28 = arith.constant 0.00787401571 : f32
    %96 = vector.broadcast %cst_28 : f32 to vector<8x1xf32>
    %97 = arith.mulf %95, %96 : vector<8x1xf32>
    %98 = math.rsqrt %97 : vector<8x1xf32>
    %99 = vector.broadcast %98 : vector<8x1xf32> to vector<8x128xf32>
    %100 = arith.mulf %92, %99 : vector<8x128xf32>
    %c127_i32_29 = arith.constant 127 : i32
    %101 = tpu.dynamic_rotate %10 by %c127_i32_29 dim 1 : vector<8x128xf32>, i32 -> vector<8x128xf32>
    %c1_i32_30 = arith.constant 1 : i32
    %102 = tpu.dynamic_rotate %10 by %c1_i32_30 dim 1 : vector<8x128xf32>, i32 -> vector<8x128xf32>
    %103 = arith.subf %101, %10 : vector<8x128xf32>
    %104 = arith.subf %10, %102 : vector<8x128xf32>
    %105 = arith.subf %101, %102 : vector<8x128xf32>
    %cst_31 = arith.constant 5.000000e-01 : f32
    %106 = vector.broadcast %cst_31 : f32 to vector<8x128xf32>
    %107 = arith.mulf %106, %105 : vector<8x128xf32>
    %108 = arith.select %4, %104, %107 : vector<8x128xi1>, vector<8x128xf32>
    %109 = arith.select %2, %103, %108 : vector<8x128xi1>, vector<8x128xf32>
    %110 = arith.cmpf ogt, %10, %102 : vector<8x128xf32>
    %111 = arith.cmpf ogt, %10, %101 : vector<8x128xf32>
    %112 = arith.andi %110, %111 : vector<8x128xi1>
    %113 = arith.andi %112, %6 : vector<8x128xi1>
    %114 = arith.cmpf olt, %10, %102 : vector<8x128xf32>
    %115 = arith.cmpf olt, %10, %101 : vector<8x128xf32>
    %116 = arith.andi %114, %115 : vector<8x128xi1>
    %117 = arith.andi %116, %6 : vector<8x128xi1>
    %c127_i32_32 = arith.constant 127 : i32
    %118 = tpu.dynamic_rotate %109 by %c127_i32_32 dim 1 : vector<8x128xf32>, i32 -> vector<8x128xf32>
    %c1_i32_33 = arith.constant 1 : i32
    %119 = tpu.dynamic_rotate %109 by %c1_i32_33 dim 1 : vector<8x128xf32>, i32 -> vector<8x128xf32>
    %120 = arith.subf %118, %109 : vector<8x128xf32>
    %121 = arith.subf %109, %119 : vector<8x128xf32>
    %122 = arith.subf %118, %119 : vector<8x128xf32>
    %cst_34 = arith.constant 5.000000e-01 : f32
    %123 = vector.broadcast %cst_34 : f32 to vector<8x128xf32>
    %124 = arith.mulf %123, %122 : vector<8x128xf32>
    %125 = arith.select %4, %121, %124 : vector<8x128xi1>, vector<8x128xf32>
    %126 = arith.select %2, %120, %125 : vector<8x128xi1>, vector<8x128xf32>
    %127 = arith.mulf %109, %109 : vector<8x128xf32>
    %cst_35 = arith.constant dense<0.000000e+00> : vector<8xf32>
    %128 = vector.multi_reduction <add>, %127, %cst_35 [1] : vector<8x128xf32> to vector<8xf32>
    %129 = vector.shape_cast %128 : vector<8xf32> to vector<8x1xf32>
    %130 = arith.mulf %126, %126 : vector<8x128xf32>
    %cst_36 = arith.constant dense<0.000000e+00> : vector<8xf32>
    %131 = vector.multi_reduction <add>, %130, %cst_36 [1] : vector<8x128xf32> to vector<8xf32>
    %132 = vector.shape_cast %131 : vector<8xf32> to vector<8x1xf32>
    %133 = arith.extui %113 : vector<8x128xi1> to vector<8x128xi32>
    %134 = arith.sitofp %133 : vector<8x128xi32> to vector<8x128xf32>
    %cst_37 = arith.constant dense<0.000000e+00> : vector<8xf32>
    %135 = vector.multi_reduction <add>, %134, %cst_37 [1] : vector<8x128xf32> to vector<8xf32>
    %136 = vector.shape_cast %135 : vector<8xf32> to vector<8x1xf32>
    %137 = arith.extui %117 : vector<8x128xi1> to vector<8x128xi32>
    %138 = arith.sitofp %137 : vector<8x128xi32> to vector<8x128xf32>
    %cst_38 = arith.constant dense<0.000000e+00> : vector<8xf32>
    %139 = vector.multi_reduction <add>, %138, %cst_38 [1] : vector<8x128xf32> to vector<8xf32>
    %140 = vector.shape_cast %139 : vector<8xf32> to vector<8x1xf32>
    %141 = arith.truncf %92 : vector<8x128xf32> to vector<8x128xbf16>
    %cst_39 = arith.constant dense<0.000000e+00> : vector<8x256xf32>
    %142 = tpu.matmul %141, %7, %cst_39 {dimension_numbers = #tpu.dot_dimension_numbers<[1], [0], [0], [1], [0, 0, 1, 1], [], []>} : vector<8x128xbf16>, vector<128x256xbf16>, vector<8x256xf32> -> vector<8x256xf32>
    %143 = arith.mulf %142, %142 : vector<8x256xf32>
    %144 = vector.extract_strided_slice %143 {offsets = [0, 0], sizes = [8, 128], strides = [1, 1]} : vector<8x256xf32> to vector<8x128xf32>
    %145 = vector.extract_strided_slice %143 {offsets = [0, 128], sizes = [8, 128], strides = [1, 1]} : vector<8x256xf32> to vector<8x128xf32>
    %146 = arith.addf %144, %145 : vector<8x128xf32>
    %147 = tpu.iota {dimensions = array<i32: 1>} : vector<8x128xi32>
    %c7_i32_40 = arith.constant 7 : i32
    %148 = vector.broadcast %c7_i32_40 : i32 to vector<8x128xi32>
    %149 = arith.cmpi slt, %147, %148 : vector<8x128xi32>
    %cst_41 = arith.constant 0xFF800000 : f32
    %150 = vector.broadcast %cst_41 : f32 to vector<8x128xf32>
    %151 = arith.select %149, %146, %150 : vector<8x128xi1>, vector<8x128xf32>
    %152 = vector.extract_strided_slice %8 {offsets = [0, 0], sizes = [1, 128], strides = [1, 1]} : vector<1x256xf32> to vector<1x128xf32>
    %cst_42 = arith.constant dense<0xFF800000> : vector<8xf32>
    %153 = vector.multi_reduction <maximumf>, %151, %cst_42 [1] : vector<8x128xf32> to vector<8xf32>
    %154 = vector.shape_cast %153 : vector<8xf32> to vector<8x1xf32>
    %155 = vector.broadcast %154 : vector<8x1xf32> to vector<8x128xf32>
    %156 = arith.cmpf oeq, %151, %155 : vector<8x128xf32>
    %cst_43 = arith.constant 0x7F800000 : f32
    %157 = vector.shape_cast %152 : vector<1x128xf32> to vector<1x128xf32>
    %158 = vector.broadcast %157 : vector<1x128xf32> to vector<8x128xf32>
    %159 = vector.broadcast %cst_43 : f32 to vector<8x128xf32>
    %160 = arith.select %156, %158, %159 : vector<8x128xi1>, vector<8x128xf32>
    %cst_44 = arith.constant dense<0x7F800000> : vector<8xf32>
    %161 = vector.multi_reduction <minimumf>, %160, %cst_44 [1] : vector<8x128xf32> to vector<8xf32>
    %162 = vector.shape_cast %161 : vector<8xf32> to vector<8x1xf32>
    %163 = arith.mulf %24, %100 : vector<8x128xf32>
    %cst_45 = arith.constant dense<0.000000e+00> : vector<8xf32>
    %164 = vector.multi_reduction <add>, %163, %cst_45 [1] : vector<8x128xf32> to vector<8xf32>
    %165 = vector.shape_cast %164 : vector<8xf32> to vector<8x1xf32>
    %cst_46 = arith.constant 0.00787401571 : f32
    %166 = vector.broadcast %cst_46 : f32 to vector<8x1xf32>
    %167 = arith.mulf %165, %166 : vector<8x1xf32>
    %168 = arith.mulf %33, %109 : vector<8x128xf32>
    %cst_47 = arith.constant dense<0.000000e+00> : vector<8xf32>
    %169 = vector.multi_reduction <add>, %168, %cst_47 [1] : vector<8x128xf32> to vector<8xf32>
    %170 = vector.shape_cast %169 : vector<8xf32> to vector<8x1xf32>
    %171 = arith.mulf %53, %129 : vector<8x1xf32>
    %172 = math.rsqrt %171 : vector<8x1xf32>
    %173 = arith.mulf %170, %172 : vector<8x1xf32>
    %174 = arith.mulf %50, %126 : vector<8x128xf32>
    %cst_48 = arith.constant dense<0.000000e+00> : vector<8xf32>
    %175 = vector.multi_reduction <add>, %174, %cst_48 [1] : vector<8x128xf32> to vector<8xf32>
    %176 = vector.shape_cast %175 : vector<8xf32> to vector<8x1xf32>
    %177 = arith.mulf %56, %132 : vector<8x1xf32>
    %178 = math.rsqrt %177 : vector<8x1xf32>
    %179 = arith.mulf %176, %178 : vector<8x1xf32>
    %180 = arith.subf %136, %60 : vector<8x1xf32>
    %181 = math.absf %180 : vector<8x1xf32>
    %182 = arith.subf %140, %64 : vector<8x1xf32>
    %183 = math.absf %182 : vector<8x1xf32>
    %cst_49 = arith.constant 0.000000e+00 : f32
    %184 = vector.broadcast %cst_49 : f32 to vector<8x128xf32>
    %185 = arith.select %37, %9, %184 : vector<8x128xi1>, vector<8x128xf32>
    %cst_50 = arith.constant dense<0.000000e+00> : vector<8xf32>
    %186 = vector.multi_reduction <add>, %185, %cst_50 [1] : vector<8x128xf32> to vector<8xf32>
    %187 = vector.shape_cast %186 : vector<8xf32> to vector<8x1xf32>
    %cst_51 = arith.constant 0.000000e+00 : f32
    %188 = vector.broadcast %cst_51 : f32 to vector<8x128xf32>
    %189 = arith.select %41, %9, %188 : vector<8x128xi1>, vector<8x128xf32>
    %cst_52 = arith.constant dense<0.000000e+00> : vector<8xf32>
    %190 = vector.multi_reduction <add>, %189, %cst_52 [1] : vector<8x128xf32> to vector<8xf32>
    %191 = vector.shape_cast %190 : vector<8xf32> to vector<8x1xf32>
    %cst_53 = arith.constant 0.000000e+00 : f32
    %192 = vector.broadcast %cst_53 : f32 to vector<8x1xf32>
    %193 = arith.cmpf ogt, %60, %192 : vector<8x1xf32>
    %cst_54 = arith.constant 1.000000e+00 : f32
    %194 = vector.broadcast %cst_54 : f32 to vector<8x1xf32>
    %195 = arith.maximumf %60, %194 : vector<8x1xf32>
    %196 = arith.divf %187, %195 : vector<8x1xf32>
    %cst_55 = arith.constant 1.000000e+00 : f32
    %197 = vector.broadcast %cst_55 : f32 to vector<8x1xf32>
    %198 = arith.subf %197, %196 : vector<8x1xf32>
    %199 = math.absf %198 : vector<8x1xf32>
    %cst_56 = arith.constant 0.000000e+00 : f32
    %200 = vector.broadcast %cst_56 : f32 to vector<8x1xf32>
    %201 = arith.select %193, %199, %200 : vector<8x1xi1>, vector<8x1xf32>
    %cst_57 = arith.constant 0.000000e+00 : f32
    %202 = vector.broadcast %cst_57 : f32 to vector<8x1xf32>
    %203 = arith.cmpf ogt, %64, %202 : vector<8x1xf32>
    %cst_58 = arith.constant 1.000000e+00 : f32
    %204 = vector.broadcast %cst_58 : f32 to vector<8x1xf32>
    %205 = arith.maximumf %64, %204 : vector<8x1xf32>
    %206 = arith.divf %191, %205 : vector<8x1xf32>
    %cst_59 = arith.constant 1.000000e+00 : f32
    %207 = vector.broadcast %cst_59 : f32 to vector<8x1xf32>
    %208 = arith.subf %207, %206 : vector<8x1xf32>
    %209 = math.absf %208 : vector<8x1xf32>
    %cst_60 = arith.constant 0.000000e+00 : f32
    %210 = vector.broadcast %cst_60 : f32 to vector<8x1xf32>
    %211 = arith.select %203, %209, %210 : vector<8x1xi1>, vector<8x1xf32>
    %212 = arith.subf %162, %86 : vector<8x1xf32>
    %213 = math.absf %212 : vector<8x1xf32>
    %214 = arith.addf %181, %183 : vector<8x1xf32>
    %215 = arith.addf %214, %201 : vector<8x1xf32>
    %216 = arith.addf %215, %211 : vector<8x1xf32>
    %cst_61 = arith.constant 5.000000e-01 : f32
    %217 = vector.broadcast %cst_61 : f32 to vector<8x1xf32>
    %218 = arith.mulf %217, %216 : vector<8x1xf32>
    %219 = arith.addf %218, %213 : vector<8x1xf32>
    %cst_62 = arith.constant 1.000000e+00 : f32
    %220 = vector.broadcast %cst_62 : f32 to vector<8x1xf32>
    %221 = arith.subf %220, %167 : vector<8x1xf32>
    %222 = arith.addf %173, %179 : vector<8x1xf32>
    %223 = arith.subf %221, %222 : vector<8x1xf32>
    %224 = arith.addf %223, %219 : vector<8x1xf32>
    %c8_i32 = arith.constant 8 : i32
    %225 = arith.muli %arg0, %c8_i32 : i32
    %226 = tpu.iota {dimensions = array<i32: 0>} : vector<8x1xi32>
    %227 = vector.broadcast %225 : i32 to vector<8x1xi32>
    %228 = arith.addi %227, %226 : vector<8x1xi32>
    %c2_i32 = arith.constant 2 : i32
    %229 = vector.broadcast %c2_i32 : i32 to vector<8x1xi32>
    %230 = arith.cmpi slt, %228, %229 : vector<8x1xi32>
    %cst_63 = arith.constant 0.000000e+00 : f32
    %231 = vector.broadcast %cst_63 : f32 to vector<8x1xf32>
    %232 = arith.select %230, %224, %231 : vector<8x1xi1>, vector<8x1xf32>
    %c0_64 = arith.constant 0 : index
    %c0_65 = arith.constant 0 : index
    %233 = vector.load %arg5[%c0_64, %c0_65] : memref<8x1xf32, #tpu.memory_space<vmem>>, vector<8x1xf32>
    tpu.vector_store %arg5[%c0_64, %c0_65], %232 {strides = array<i32>} : memref<8x1xf32, #tpu.memory_space<vmem>>, vector<8x1xf32>,
    return
  }
  func.func @transform_0(%arg0: i32) -> (i32, i32) {
    %c0_i32 = arith.constant 0 : i32
    %c0_i32_0 = arith.constant 0 : i32
    return %arg0, %c0_i32 : i32, i32
  }
  func.func @transform_1(%arg0: i32) -> (i32, i32) {
    %c0_i32 = arith.constant 0 : i32
    %c0_i32_0 = arith.constant 0 : i32
    return %arg0, %c0_i32 : i32, i32
  }
  func.func @transform_2(%arg0: i32) -> (i32, i32) {
    %c0_i32 = arith.constant 0 : i32
    %c0_i32_0 = arith.constant 0 : i32
    %c0_i32_1 = arith.constant 0 : i32
    return %c0_i32, %c0_i32_0 : i32, i32
  }
  func.func @transform_3(%arg0: i32) -> (i32, i32) {
    %c0_i32 = arith.constant 0 : i32
    %c0_i32_0 = arith.constant 0 : i32
    %c0_i32_1 = arith.constant 0 : i32
    return %c0_i32, %c0_i32_0 : i32, i32
  }
  func.func @transform_4(%arg0: i32) -> (i32, i32) {
    %c0_i32 = arith.constant 0 : i32
    %c0_i32_0 = arith.constant 0 : i32
    return %arg0, %c0_i32 : i32, i32
  }
}

</mosaic_0001>

<llo_original>
// kernel: tpu_custom_call.1
$region0: #{tpu_custom_call.1}
  #allocation0 [shape = 'u32[]', space=smem, size = 0x4, offset = 0x4, fixed_abs, tag = 'smem constant byte address 0x4 - core index']
  #allocation1 [shape = 'u32[144,128]{1,0:T(1,128)}', space=vmem, size = 0x12000, scoped, tag = 'internal scratch']
  %s0 = inlined_call_operand.hbm [shape: f32[8,128], index: 0, kind: input, shape index: {}]
  %s1 = inlined_call_operand.hbm [shape: f32[8,128], index: 1, kind: input, shape index: {}]
  %s2 = inlined_call_operand.hbm [shape: bf16[128,256], index: 2, kind: input, shape index: {}]
  %s3 = inlined_call_operand.vmem [shape: f32[1,256], index: 3, kind: input, shape index: {}]
  %s4 = inlined_call_operand.vmem [shape: f32[8,1], index: 4, kind: output, shape index: {}]
  %s5 = sld [smem:[#allocation0]]
  $region38: #{tpu_custom_call.1} parent=0
    _
  %s7 = ssub.s32 1, %s5
  %s8 = scalar_select 0, %s7, %s5
  $region1: #{tpu_custom_call.1} parent=0
    #allocation2 [shape = 'u8[4096]{0}', space=vmem, size = 0x1000, scoped, tag = 'input window, operand 0, single buffered']
    #allocation3 [shape = 's32[1]{0}', space=sflag, size = 0x4, scoped, tag = 'scoped memory for tpu_custom_call.1']
    #allocation4 [shape = 'u8[4096]{0}', space=vmem, size = 0x1000, scoped, tag = 'input window, operand 1, single buffered']
    #allocation5 [shape = 's32[1]{0}', space=sflag, size = 0x4, scoped, tag = 'scoped memory for tpu_custom_call.1']
    #allocation6 [shape = 'u8[65536]{0}', space=vmem, size = 0x10000, scoped, tag = 'input window, operand 2, single buffered']
    %9 = vsyncpa [#allocation3], 0
    %10 = vsyncpa [#allocation5], 0
    // Predicated region
    $region2: #{tpu_custom_call.1} parent=1 // pred_check
      _
    $region3: #{tpu_custom_call.1} parent=1 // pred_check_branch
      %12 = sbr.rel (0) target = $region5
    $region4: #{tpu_custom_call.1} parent=1 // pred_region
      %s14 = ssub.s32 128, 128
      %15 = vsyncadd [#allocation3], %s14
      %s17 = sshll.u32 [#allocation2], 4
      %s18 = int_to_ptr.vmem [resolvable:$true] %s17
      %20 = dma.hbm_to_vmem [thread:$0]  %s0, 128, %s18, [#allocation3]
    $region5: #{tpu_custom_call.1} parent=1 // pred_fallthru
      _
    // Predicated region
    $region6: #{tpu_custom_call.1} parent=1 // pred_check
      _
    $region7: #{tpu_custom_call.1} parent=1 // pred_check_branch
      %22 = sbr.rel (0) target = $region9
    $region8: #{tpu_custom_call.1} parent=1 // pred_region
      %s24 = ssub.s32 128, 128
      %25 = vsyncadd [#allocation5], %s24
      %s27 = sshll.u32 [#allocation4], 4
      %s28 = int_to_ptr.vmem [resolvable:$true] %s27
      %30 = dma.hbm_to_vmem [thread:$0]  %s1, 128, %s28, [#allocation5]
    $region9: #{tpu_custom_call.1} parent=1 // pred_fallthru
      _
    // Predicated region
    $region10: #{tpu_custom_call.1} parent=1 // pred_check
      _
    $region11: #{tpu_custom_call.1} parent=1 // pred_check_branch
      %32 = sbr.rel (0) target = $region13
    $region12: #{tpu_custom_call.1} parent=1 // pred_region
      %s34 = ssub.s32 2048, 2048
      %35 = vsyncadd [#allocation5], %s34
      %s36 = sshll.u32 [#allocation6], 4
      %s37 = int_to_ptr.vmem [resolvable:$true] %s36
      %42 = dma.hbm_to_vmem [thread:$0]  %s2, 2048, %s37, [#allocation5], 128, 128, 8
    $region13: #{tpu_custom_call.1} parent=1 // pred_fallthru
      _
    // Predicated region
    $region14: #{tpu_custom_call.1} parent=1 // pred_check
      _
    $region15: #{tpu_custom_call.1} parent=1 // pred_check_branch
      %44 = sbr.rel (0) target = $region17
    $region16: #{tpu_custom_call.1} parent=1 // pred_region
      _
    $region17: #{tpu_custom_call.1} parent=1 // pred_fallthru
      _
    // Predicated region
    $region18: #{tpu_custom_call.1} parent=1 // pred_check
      _
    $region19: #{tpu_custom_call.1} parent=1 // pred_check_branch
      %46 = sbr.rel (0) target = $region21
    $region20: #{tpu_custom_call.1} parent=1 // pred_region
      %47 = dma.done [#allocation3], 128
    $region21: #{tpu_custom_call.1} parent=1 // pred_fallthru
      _
    // Predicated region
    $region22: #{tpu_custom_call.1} parent=1 // pred_check
      _
    $region23: #{tpu_custom_call.1} parent=1 // pred_check_branch
      %49 = sbr.rel (0) target = $region25
    $region24: #{tpu_custom_call.1} parent=1 // pred_region
      %50 = dma.done [#allocation5], 128
    $region25: #{tpu_custom_call.1} parent=1 // pred_fallthru
      _
    // Predicated region
    $region26: #{tpu_custom_call.1} parent=1 // pred_check
      _
    $region27: #{tpu_custom_call.1} parent=1 // pred_check_branch
      %52 = sbr.rel (0) target = $region29
    $region28: #{tpu_custom_call.1} parent=1 // pred_region
      %53 = dma.done [#allocation5], 2048
    $region29: #{tpu_custom_call.1} parent=1 // pred_fallthru
      _
    %v55 = vlaneseq
    %v56 = vand.u32 %v55, 127
    %vm57 = vcmp.eq.s32.totalorder %v56, 0
    %vm58 = vcmp.eq.s32.totalorder %v56, 127
    %vm59 = vmor %vm57, %vm58
    %vm60 = vmxor %vm59, 1
    %v61 = vld [vmem:[#allocation6] sm:$0xff]
    %v62 = vld [vmem:[#allocation6 + $0x8] sm:$0xff]
    %v63 = vld [vmem:[#allocation6 + $0x10] sm:$0xff]
    %v64 = vld [vmem:[#allocation6 + $0x18] sm:$0xff]
    %v65 = vld [vmem:[#allocation6 + $0x20] sm:$0xff]
    %v66 = vld [vmem:[#allocation6 + $0x28] sm:$0xff]
    %v67 = vld [vmem:[#allocation6 + $0x30] sm:$0xff]
    %v68 = vld [vmem:[#allocation6 + $0x38] sm:$0xff]
    %v69 = vld [vmem:[#allocation6 + $0x40] sm:$0xff]
    %v70 = vld [vmem:[#allocation6 + $0x48] sm:$0xff]
    %v71 = vld [vmem:[#allocation6 + $0x50] sm:$0xff]
    %v72 = vld [vmem:[#allocation6 + $0x58] sm:$0xff]
    %v73 = vld [vmem:[#allocation6 + $0x60] sm:$0xff]
    %v74 = vld [vmem:[#allocation6 + $0x68] sm:$0xff]
    %v75 = vld [vmem:[#allocation6 + $0x70] sm:$0xff]
    %v76 = vld [vmem:[#allocation6 + $0x78] sm:$0xff]
    %v77 = vld [vmem:[%s3] sm:$0x3]
    %v78 = vld [vmem:[#allocation2] sm:$0xff]
    %v79 = vld [vmem:[#allocation4] sm:$0xff]
    %80 = vadd.xlane.f32.xlu0 %v78
    %v81 = vpop.xlane.xlu0 %80
    %v82 = vrcp.pop 128.0
    %v83 = vmul.f32 %v81, %v82
    %v84 = vsub.f32 %v78, %v83
    %v85 = vmul.f32 %v84, %v84
    %86 = vadd.xlane.f32.xlu0 %v85
    %v87 = vpop.xlane.xlu0 %86
    %v88 = vmul.f32 %v87, 0.007874016
    %v89 = vrsqrt.pop %v88
    %v90 = vmul.f32 %v84, %v89
    %91 = vrot.lane.b32.xlu0 %v78, 127
    %v92 = vpop.permute.xlu0 %91
    %93 = vrot.lane.b32.xlu0 %v78, 1
    %v94 = vpop.permute.xlu0 %93
    %v95 = vsub.f32 %v92, %v78
    %v96 = vsub.f32 %v78, %v94
    %v97 = vsub.f32 %v92, %v94
    %v98 = vmul.f32 %v97, 0.5
    %v99 = vsel %vm58, %v96, %v98
    %v100 = vsel %vm57, %v95, %v99
    %vm101 = vcmp.gt.f32.partialorder %v78, %v94
    %vm102 = vcmp.gt.f32.partialorder %v78, %v92
    %vm103 = vmand %vm101, %vm102
    %vm104 = vmand %vm103, %vm60
    %vm105 = vcmp.lt.f32.partialorder %v78, %v94
    %vm106 = vcmp.lt.f32.partialorder %v78, %v92
    %vm107 = vmand %vm105, %vm106
    %vm108 = vmand %vm107, %vm60
    %109 = vrot.lane.b32.xlu0 %v100, 127
    %v110 = vpop.permute.xlu0 %109
    %111 = vrot.lane.b32.xlu0 %v100, 1
    %v112 = vpop.permute.xlu0 %111
    %v113 = vsub.f32 %v110, %v100
    %v114 = vsub.f32 %v100, %v112
    %v115 = vsub.f32 %v110, %v112
    %v116 = vmul.f32 %v115, 0.5
    %v117 = vsel %vm58, %v114, %v116
    %v118 = vsel %vm57, %v113, %v117
    %v119 = vmul.f32 %v100, %v100
    %120 = vadd.xlane.f32.xlu0 %v119
    %v121 = vpop.xlane.xlu0 %120
    %v122 = vmul.f32 %v118, %v118
    %123 = vadd.xlane.f32.xlu0 %v122
    %v124 = vpop.xlane.xlu0 %123
    %v125 = vsel %vm104, 1, 0
    %v126 = vcvt.s32.f32 %v125
    %127 = vadd.xlane.f32.xlu0 %v126
    %v128 = vpop.xlane.xlu0 %127
    %v129 = vsel %vm108, 1, 0
    %v130 = vcvt.s32.f32 %v129
    %131 = vadd.xlane.f32.xlu0 %v130
    %v132 = vpop.xlane.xlu0 %131
    %v133 = vpack.c.bf16 %v84, %v84
    %v150 = vunpack.c.l.b16 %v61
    %v151 = vunpack.c.h.b16 %v61
    %v152 = vunpack.c.l.b16 %v62
    %v153 = vunpack.c.h.b16 %v62
    %v154 = vunpack.c.l.b16 %v63
    %v155 = vunpack.c.h.b16 %v63
    %v156 = vunpack.c.l.b16 %v64
    %v157 = vunpack.c.h.b16 %v64
    %v158 = vunpack.c.l.b16 %v65
    %v159 = vunpack.c.h.b16 %v65
    %v160 = vunpack.c.l.b16 %v66
    %v161 = vunpack.c.h.b16 %v66
    %v162 = vunpack.c.l.b16 %v67
    %v163 = vunpack.c.h.b16 %v67
    %v164 = vunpack.c.l.b16 %v68
    %v165 = vunpack.c.h.b16 %v68
    %v166 = vunpack.c.l.b16 %v69
    %v167 = vunpack.c.h.b16 %v69
    %v168 = vunpack.c.l.b16 %v70
    %v169 = vunpack.c.h.b16 %v70
    %v170 = vunpack.c.l.b16 %v71
    %v171 = vunpack.c.h.b16 %v71
    %v172 = vunpack.c.l.b16 %v72
    %v173 = vunpack.c.h.b16 %v72
    %v174 = vunpack.c.l.b16 %v73
    %v175 = vunpack.c.h.b16 %v73
    %v176 = vunpack.c.l.b16 %v74
    %v177 = vunpack.c.h.b16 %v74
    %v178 = vunpack.c.l.b16 %v75
    %v179 = vunpack.c.h.b16 %v75
    %v180 = vunpack.c.l.b16 %v76
    %v181 = vunpack.c.h.b16 %v76
    %v182 = vpack.c.b16 %v152, %v150
    %v183 = vpack.c.b16 %v153, %v151
    %v184 = vpack.c.b16 %v156, %v154
    %v185 = vpack.c.b16 %v157, %v155
    %v186 = vpack.c.b16 %v160, %v158
    %v187 = vpack.c.b16 %v161, %v159
    %v188 = vpack.c.b16 %v164, %v162
    %v189 = vpack.c.b16 %v165, %v163
    %v190 = vpack.c.b16 %v168, %v166
    %v191 = vpack.c.b16 %v169, %v167
    %v192 = vpack.c.b16 %v172, %v170
    %v193 = vpack.c.b16 %v173, %v171
    %v194 = vpack.c.b16 %v176, %v174
    %v195 = vpack.c.b16 %v177, %v175
    %v196 = vpack.c.b16 %v180, %v178
    %v197 = vpack.c.b16 %v181, %v179
    %214 = vmatprep.subr.bf16.mxu0 %v197
    %215 = vmatpush1.bf16.msra.mxu0 %v196
    %216 = vmatprep.subr.bf16.mxu0 %v195
    %217 = vmatpush1.bf16.msra.mxu0 %v194
    %218 = vmatprep.subr.bf16.mxu0 %v193
    %219 = vmatpush1.bf16.msra.mxu0 %v192
    %220 = vmatprep.subr.bf16.mxu0 %v191
    %221 = vmatpush1.bf16.msra.mxu0 %v190
    %222 = vmatprep.subr.bf16.mxu0 %v189
    %223 = vmatpush1.bf16.msra.mxu0 %v188
    %224 = vmatprep.subr.bf16.mxu0 %v187
    %225 = vmatpush1.bf16.msra.mxu0 %v186
    %226 = vmatprep.subr.bf16.mxu0 %v185
    %227 = vmatpush1.bf16.msra.mxu0 %v184
    %228 = vmatprep.subr.bf16.mxu0 %v183
    %229 = vmatpush1.bf16.msra.mxu0 %v182
    %230 = vmatprep.subr.bf16.mxu0 0
    %231 = vmatpush2.bf16.msra.mxu0 0
    %232 = vmatprep.subr.bf16.mxu0 0
    %233 = vmatpush2.bf16.msra.mxu0 0
    %234 = vmatprep.subr.bf16.mxu0 0
    %235 = vmatpush2.bf16.msra.mxu0 0
    %236 = vmatprep.subr.bf16.mxu0 0
    %237 = vmatpush2.bf16.msra.mxu0 0
    %238 = vmatprep.subr.bf16.mxu0 0
    %239 = vmatpush2.bf16.msra.mxu0 0
    %240 = vmatprep.subr.bf16.mxu0 0
    %241 = vmatpush2.bf16.msra.mxu0 0
    %242 = vmatprep.subr.bf16.mxu0 0
    %243 = vmatpush2.bf16.msra.mxu0 0
    %244 = vmatprep.subr.bf16.mxu0 0
    %245 = vmatpush2.bf16.msra.mxu0 0
    %246 = vmatprep.mubr.bf16.mxu0 0
    %247 = vmatmul.mubr.bf16.gmra.mxu0 %v133
    %v248 = vpop.f32.mrf.mxu0
    %v249 = vadd.f32 0.0, %v248
    %v250 = vpop.f32.mrf.mxu0
    %v251 = vadd.f32 0.0, %v250
    %v252 = vpop.f32.mrf.mxu0
    %v253 = vpop.f32.mrf.mxu0
    %254 = vdwg.mxu0
    %v255 = vmul.f32 %v249, %v249
    %v256 = vmul.f32 %v251, %v251
    %v257 = vadd.f32 %v255, %v256
    %vm258 = vcmp.lt.s32.totalorder %v56, 7
    %v259 = vsel %vm258, %v257, -inf
    %260 = vmax.xlane.f32.xlu0 %v259
    %v261 = vpop.xlane.xlu0 %260
    %vm262 = vcmp.eq.f32.partialorder %v259, %v261
    %v264 = vlaneseq
    %v265 = vshrl.u32 %v264, 7
    %v266 = vsub.s32 0, %v265
    %v267 = vrot.slane %v77, %v266
    %v269 = vsel %vm262, %v267, inf
    %270 = vmin.xlane.f32.xlu0 %v269
    %v271 = vpop.xlane.xlu0 %270
    %272 = vadd.xlane.f32.xlu0 %v79
    %v273 = vpop.xlane.xlu0 %272
    %v274 = vmul.f32 %v273, %v82
    %v275 = vsub.f32 %v79, %v274
    %v276 = vmul.f32 %v275, %v275
    %277 = vadd.xlane.f32.xlu0 %v276
    %v278 = vpop.xlane.xlu0 %277
    %v279 = vmul.f32 %v278, 0.007874016
    %v280 = vrsqrt.pop %v279
    %v281 = vmul.f32 %v275, %v280
    %282 = vrot.lane.b32.xlu0 %v79, 127
    %v283 = vpop.permute.xlu0 %282
    %284 = vrot.lane.b32.xlu0 %v79, 1
    %v285 = vpop.permute.xlu0 %284
    %v286 = vsub.f32 %v283, %v79
    %v287 = vsub.f32 %v79, %v285
    %v288 = vsub.f32 %v283, %v285
    %v289 = vmul.f32 %v288, 0.5
    %v290 = vsel %vm58, %v287, %v289
    %v291 = vsel %vm57, %v286, %v290
    %vm292 = vcmp.gt.f32.partialorder %v79, %v285
    %vm293 = vcmp.gt.f32.partialorder %v79, %v283
    %vm294 = vmand %vm292, %vm293
    %vm295 = vmand %vm294, %vm60
    %vm296 = vcmp.lt.f32.partialorder %v79, %v285
    %vm297 = vcmp.lt.f32.partialorder %v79, %v283
    %vm298 = vmand %vm296, %vm297
    %vm299 = vmand %vm298, %vm60
    %300 = vrot.lane.b32.xlu0 %v291, 127
    %v301 = vpop.permute.xlu0 %300
    %302 = vrot.lane.b32.xlu0 %v291, 1
    %v303 = vpop.permute.xlu0 %302
    %v304 = vsub.f32 %v301, %v291
    %v305 = vsub.f32 %v291, %v303
    %v306 = vsub.f32 %v301, %v303
    %v307 = vmul.f32 %v306, 0.5
    %v308 = vsel %vm58, %v305, %v307
    %v309 = vsel %vm57, %v304, %v308
    %v310 = vmul.f32 %v291, %v291
    %311 = vadd.xlane.f32.xlu0 %v310
    %v312 = vpop.xlane.xlu0 %311
    %v313 = vmul.f32 %v309, %v309
    %314 = vadd.xlane.f32.xlu0 %v313
    %v315 = vpop.xlane.xlu0 %314
    %v316 = vsel %vm295, 1, 0
    %v317 = vcvt.s32.f32 %v316
    %318 = vadd.xlane.f32.xlu0 %v317
    %v319 = vpop.xlane.xlu0 %318
    %v320 = vsel %vm299, 1, 0
    %v321 = vcvt.s32.f32 %v320
    %322 = vadd.xlane.f32.xlu0 %v321
    %v323 = vpop.xlane.xlu0 %322
    %v324 = vpack.c.bf16 %v275, %v275
    %325 = vmatprep.subr.bf16.mxu0 %v197
    %326 = vmatpush1.bf16.msra.mxu0 %v196
    %327 = vmatprep.subr.bf16.mxu0 %v195
    %328 = vmatpush1.bf16.msra.mxu0 %v194
    %329 = vmatprep.subr.bf16.mxu0 %v193
    %330 = vmatpush1.bf16.msra.mxu0 %v192
    %331 = vmatprep.subr.bf16.mxu0 %v191
    %332 = vmatpush1.bf16.msra.mxu0 %v190
    %333 = vmatprep.subr.bf16.mxu0 %v189
    %334 = vmatpush1.bf16.msra.mxu0 %v188
    %335 = vmatprep.subr.bf16.mxu0 %v187
    %336 = vmatpush1.bf16.msra.mxu0 %v186
    %337 = vmatprep.subr.bf16.mxu0 %v185
    %338 = vmatpush1.bf16.msra.mxu0 %v184
    %339 = vmatprep.subr.bf16.mxu0 %v183
    %340 = vmatpush1.bf16.msra.mxu0 %v182
    %341 = vmatprep.subr.bf16.mxu0 0
    %342 = vmatpush2.bf16.msra.mxu0 0
    %343 = vmatprep.subr.bf16.mxu0 0
    %344 = vmatpush2.bf16.msra.mxu0 0
    %345 = vmatprep.subr.bf16.mxu0 0
    %346 = vmatpush2.bf16.msra.mxu0 0
    %347 = vmatprep.subr.bf16.mxu0 0
    %348 = vmatpush2.bf16.msra.mxu0 0
    %349 = vmatprep.subr.bf16.mxu0 0
    %350 = vmatpush2.bf16.msra.mxu0 0
    %351 = vmatprep.subr.bf16.mxu0 0
    %352 = vmatpush2.bf16.msra.mxu0 0
    %353 = vmatprep.subr.bf16.mxu0 0
    %354 = vmatpush2.bf16.msra.mxu0 0
    %355 = vmatprep.subr.bf16.mxu0 0
    %356 = vmatpush2.bf16.msra.mxu0 0
    %357 = vmatprep.mubr.bf16.mxu0 0
    %358 = vmatmul.mubr.bf16.gmra.mxu0 %v324
    %v359 = vpop.f32.mrf.mxu0
    %v360 = vadd.f32 0.0, %v359
    %v361 = vpop.f32.mrf.mxu0
    %v362 = vadd.f32 0.0, %v361
    %v363 = vpop.f32.mrf.mxu0
    %v364 = vpop.f32.mrf.mxu0
    %365 = vdwg.mxu0
    %v366 = vmul.f32 %v360, %v360
    %v367 = vmul.f32 %v362, %v362
    %v368 = vadd.f32 %v366, %v367
    %v369 = vsel %vm258, %v368, -inf
    %370 = vmax.xlane.f32.xlu0 %v369
    %v371 = vpop.xlane.xlu0 %370
    %vm372 = vcmp.eq.f32.partialorder %v369, %v371
    %v373 = vsel %vm372, %v267, inf
    %374 = vmin.xlane.f32.xlu0 %v373
    %v375 = vpop.xlane.xlu0 %374
    %v376 = vmul.f32 %v90, %v281
    %377 = vadd.xlane.f32.xlu0 %v376
    %v378 = vpop.xlane.xlu0 %377
    %v379 = vmul.f32 %v378, 0.007874016
    %v380 = vmul.f32 %v100, %v291
    %381 = vadd.xlane.f32.xlu0 %v380
    %v382 = vpop.xlane.xlu0 %381
    %v383 = vmul.f32 %v121, %v312
    %v384 = vrsqrt.pop %v383
    %v385 = vmul.f32 %v382, %v384
    %v386 = vmul.f32 %v118, %v309
    %387 = vadd.xlane.f32.xlu0 %v386
    %v388 = vpop.xlane.xlu0 %387
    %v389 = vmul.f32 %v124, %v315
    %v390 = vrsqrt.pop %v389
    %v391 = vmul.f32 %v388, %v390
    %v392 = vsub.f32 %v319, %v128
    %v393 = vand.u32 2147483647, %v392
    %v394 = vsub.f32 %v323, %v132
    %v395 = vand.u32 2147483647, %v394
    %v396 = vsel %vm104, %v78, 0.0
    %397 = vadd.xlane.f32.xlu0 %v396
    %v398 = vpop.xlane.xlu0 %397
    %v399 = vsel %vm108, %v78, 0.0
    %400 = vadd.xlane.f32.xlu0 %v399
    %v401 = vpop.xlane.xlu0 %400
    %vm402 = vcmp.gt.f32.partialorder %v128, 0.0
    %v403 = vmax.f32 %v128, 1.0
    %v404 = vrcp.pop %v403
    %v405 = vmul.f32 %v398, %v404
    %v406 = vsub.f32 1.0, %v405
    %v407 = vand.u32 2147483647, %v406
    %v408 = vsel %vm402, %v407, 0.0
    %vm409 = vcmp.gt.f32.partialorder %v132, 0.0
    %v410 = vmax.f32 %v132, 1.0
    %v411 = vrcp.pop %v410
    %v412 = vmul.f32 %v401, %v411
    %v413 = vsub.f32 1.0, %v412
    %v414 = vand.u32 2147483647, %v413
    %v415 = vsel %vm409, %v414, 0.0
    %v416 = vsub.f32 %v375, %v271
    %v417 = vand.u32 2147483647, %v416
    %v418 = vadd.f32 %v393, %v395
    %v419 = vadd.f32 %v418, %v408
    %v420 = vadd.f32 %v419, %v415
    %v421 = vmul.f32 %v420, 0.5
    %v422 = vadd.f32 %v421, %v417
    %v423 = vsub.f32 1.0, %v379
    %v424 = vadd.f32 %v385, %v391
    %v425 = vsub.f32 %v423, %v424
    %v426 = vadd.f32 %v425, %v422
    %s427 = smul.u32 0, 8
    %v428 = vlaneseq
    %v429 = vshrl.u32 %v428, 7
    %v430 = vstv %s427
    %v431 = vadd.s32 %v430, %v429
    %vm432 = vcmp.lt.s32.totalorder %v431, 2
    %v433 = vsel %vm432, %v426, 0.0
    %vm434 = vcmask 7168
    %435 = vst.msk [vmem:[%s4] sm:$0xff] %vm434, %v433
    // Predicated region
    $region30: #{tpu_custom_call.1} parent=1 // pred_check
      _
    $region31: #{tpu_custom_call.1} parent=1 // pred_check_branch
      %437 = sbr.rel (0) target = $region33
    $region32: #{tpu_custom_call.1} parent=1 // pred_region
      _
    $region33: #{tpu_custom_call.1} parent=1 // pred_fallthru
      _
    // Predicated region
    $region34: #{tpu_custom_call.1} parent=1 // pred_check
      _
    $region35: #{tpu_custom_call.1} parent=1 // pred_check_branch
      %439 = sbr.rel (0) target = $region37
    $region36: #{tpu_custom_call.1} parent=1 // pred_region
      _
    $region37: #{tpu_custom_call.1} parent=1 // pred_fallthru
      _
    %440 = vsyncpa [#allocation3], 1
    %441 = vsyncpa [#allocation5], 1

</llo_original>
